<compile_context>
chip_gen: v5e
topology: v5e:2x2
jax: 0.10.0
libtpu: 0.0.40
codegen_flags: <defaults>
</compile_context>

<pallas_src>
import jax
import jax.numpy as jnp
from jax.experimental import pallas as pl
from jax.experimental.pallas import tpu as pltpu


def _round_up(x, m):
    return ((x + m - 1) // m) * m


def _mlp_kernel(x_ref, w1_ref, b1_ref, w2_ref, b2_ref, o_ref):
    # layer1: x @ W1 + b1   (MXU matmul, f32 accumulate; bias add in f32 on VPU)
    h = jnp.dot(x_ref[...], w1_ref[...], preferred_element_type=jnp.float32)
    h = h + b1_ref[...]            # (1, Mp) broadcasts over the batch tile
    # layer2: h @ W2 + b2
    y = jnp.dot(h, w2_ref[...], preferred_element_type=jnp.float32)
    y = y + b2_ref[...]            # (1, Np) broadcasts over the batch tile
    o_ref[...] = y.astype(o_ref.dtype)


def my_torch_model_forward(x, w1, b1, w2, b2, *, batch_tile=256):
    """Forward pass of MyTorchModel.

    Args:
      x:  (batch, input_size) f32
      w1: (input_size, middle_size) f32   (PyTorch layer1.weight transposed)
      b1: (middle_size,) f32
      w2: (middle_size, output_size) f32  (PyTorch layer2.weight transposed)
      b2: (output_size,) f32
    Returns:
      (batch, output_size) f32
    """
    batch, input_size = x.shape
    middle_size = w1.shape[1]
    output_size = w2.shape[1]

    # ---- pad to TPU-friendly sizes (lane-dense last dims, sublane-aligned batch)
    kp = _round_up(input_size, 128)     # K of layer1
    mp = _round_up(middle_size, 128)    # N of layer1 / K of layer2
    np_ = _round_up(output_size, 128)   # N of layer2 (lane-dense output)

    if batch <= batch_tile:
        tm = _round_up(batch, 8)        # single tile, sublane-aligned
        bp = tm
    else:
        tm = batch_tile                 # tile the batch, weights stay resident
        bp = _round_up(batch, batch_tile)

    f32 = jnp.float32
    xp  = jnp.pad(x.astype(f32),  ((0, bp - batch), (0, kp - input_size)))
    w1p = jnp.pad(w1.astype(f32), ((0, kp - input_size), (0, mp - middle_size)))
    b1p = jnp.pad(b1.astype(f32), (0, mp - middle_size)).reshape(1, mp)
    w2p = jnp.pad(w2.astype(f32), ((0, mp - middle_size), (0, np_ - output_size)))
    b2p = jnp.pad(b2.astype(f32), (0, np_ - output_size)).reshape(1, np_)

    # ---- advisory cost estimate for XLA's scheduler
    flops = 2 * bp * kp * mp + 2 * bp * mp * np_
    bytes_accessed = 4 * (bp * kp + kp * mp + mp + mp * np_ + np_ + bp * np_)
    cost = pl.CostEstimate(flops=int(flops), transcendentals=0,
                           bytes_accessed=int(bytes_accessed))

    # ---- VMEM budget: double-buffered x/out tiles + resident weights + h tile.
    vmem_needed = 4 * (2 * tm * kp + 2 * tm * np_
                       + 2 * (kp * mp + mp + mp * np_ + np_)
                       + tm * mp)
    vmem_limit = None
    if vmem_needed > (32 << 20):
        vmem_limit = min(int(vmem_needed * 1.25), 100 << 20)

    y_pad = pl.pallas_call(
        _mlp_kernel,
        out_shape=jax.ShapeDtypeStruct((bp, np_), jnp.float32),
        grid_spec=pltpu.PrefetchScalarGridSpec(
            num_scalar_prefetch=0,
            grid=(bp // tm,),
            in_specs=[
                pl.BlockSpec((tm, kp),  lambda i: (i, 0)),  # x: per-tile
                pl.BlockSpec((kp, mp),  lambda i: (0, 0)),  # W1: resident
                pl.BlockSpec((1, mp),   lambda i: (0, 0)),  # b1: resident
                pl.BlockSpec((mp, np_), lambda i: (0, 0)),  # W2: resident
                pl.BlockSpec((1, np_),  lambda i: (0, 0)),  # b2: resident
            ],
            out_specs=pl.BlockSpec((tm, np_), lambda i: (i, 0)),
        ),
        compiler_params=pltpu.CompilerParams(
            dimension_semantics=("parallel",),   # shard batch tiles across TCs (v7x)
            vmem_limit_bytes=vmem_limit,
        ),
        cost_estimate=cost,
    )(xp, w1p, b1p, w2p, b2p)

    # Slice away the padding introduced for lane density / batch alignment.
    return y_pad[:batch, :output_size]


if __name__ == "__main__":
    # Small shapes implied by the module: Linear(input, middle), Linear(middle, out).
    batch, input_size, middle_size, output_size = 8, 32, 64, 16

    key = jax.random.PRNGKey(0)
    kx, kw1, kb1, kw2, kb2 = jax.random.split(key, 5)

    x = jax.random.normal(kx, (batch, input_size), dtype=jnp.float32)

    # Deterministic PyTorch-style uniform init, stored in (in, out) layout.
    bound1 = 1.0 / jnp.sqrt(input_size)
    w1 = jax.random.uniform(kw1, (input_size, middle_size), jnp.float32,
                            -bound1, bound1)
    b1 = jax.random.uniform(kb1, (middle_size,), jnp.float32, -bound1, bound1)

    bound2 = 1.0 / jnp.sqrt(middle_size)
    w2 = jax.random.uniform(kw2, (middle_size, output_size), jnp.float32,
                            -bound2, bound2)
    b2 = jax.random.uniform(kb2, (output_size,), jnp.float32, -bound2, bound2)

    y = my_torch_model_forward(x, w1, b1, w2, b2)
    y = jax.block_until_ready(y)

    # Reference check in plain JAX (same math as the PyTorch forward).
    y_ref = (x @ w1 + b1) @ w2 + b2
    assert y.shape == (batch, output_size)
    assert jnp.allclose(y, y_ref, atol=1e-5, rtol=1e-5)

    print("KERNEL_OK")
</pallas_src>

<mosaic_0001>
module attributes {stable_mosaic.version = 11 : i64} {
  func.func @_mlp_kernel(%arg0: i32, %arg1: memref<8x128xf32, #tpu.memory_space<vmem>>, %arg2: memref<128x128xf32, #tpu.memory_space<vmem>>, %arg3: memref<1x128xf32, #tpu.memory_space<vmem>>, %arg4: memref<128x128xf32, #tpu.memory_space<vmem>>, %arg5: memref<1x128xf32, #tpu.memory_space<vmem>>, %arg6: memref<8x128xf32, #tpu.memory_space<vmem>>) attributes {dimension_semantics = [#tpu.dimension_semantics<parallel>], iteration_bounds = array<i64: 1>, scalar_prefetch = 0 : i64, scratch_operands = 0 : i64, tpu.core_type = #tpu.core_type<tc>, window_params = [{transform_indices = @transform_0, window_bounds = array<i64: 8, 128>}, {pipeline_mode = #tpu.pipeline_mode<synchronous>, transform_indices = @transform_1, window_bounds = array<i64: 128, 128>}, {pipeline_mode = #tpu.pipeline_mode<synchronous>, transform_indices = @transform_2, window_bounds = array<i64: 1, 128>}, {pipeline_mode = #tpu.pipeline_mode<synchronous>, transform_indices = @transform_3, window_bounds = array<i64: 128, 128>}, {pipeline_mode = #tpu.pipeline_mode<synchronous>, transform_indices = @transform_4, window_bounds = array<i64: 1, 128>}, {transform_indices = @transform_5, window_bounds = array<i64: 8, 128>}]} {
    %c0 = arith.constant 0 : index
    %c0_0 = arith.constant 0 : index
    %0 = vector.load %arg1[%c0, %c0_0] : memref<8x128xf32, #tpu.memory_space<vmem>>, vector<8x128xf32>
    %c0_1 = arith.constant 0 : index
    %c0_2 = arith.constant 0 : index
    %1 = vector.load %arg2[%c0_1, %c0_2] : memref<128x128xf32, #tpu.memory_space<vmem>>, vector<128x128xf32>
    %cst = arith.constant dense<0.000000e+00> : vector<8x128xf32>
    %2 = tpu.matmul %0, %1, %cst {dimension_numbers = #tpu.dot_dimension_numbers<[1], [0], [0], [1], [0, 0, 1, 1], [], []>} : vector<8x128xf32>, vector<128x128xf32>, vector<8x128xf32> -> vector<8x128xf32>
    %c0_3 = arith.constant 0 : index
    %c0_4 = arith.constant 0 : index
    %3 = vector.load %arg3[%c0_3, %c0_4] : memref<1x128xf32, #tpu.memory_space<vmem>>, vector<1x128xf32>
    %4 = vector.broadcast %3 : vector<1x128xf32> to vector<8x128xf32>
    %5 = arith.addf %2, %4 : vector<8x128xf32>
    %c0_5 = arith.constant 0 : index
    %c0_6 = arith.constant 0 : index
    %6 = vector.load %arg4[%c0_5, %c0_6] : memref<128x128xf32, #tpu.memory_space<vmem>>, vector<128x128xf32>
    %cst_7 = arith.constant dense<0.000000e+00> : vector<8x128xf32>
    %7 = tpu.matmul %5, %6, %cst_7 {dimension_numbers = #tpu.dot_dimension_numbers<[1], [0], [0], [1], [0, 0, 1, 1], [], []>} : vector<8x128xf32>, vector<128x128xf32>, vector<8x128xf32> -> vector<8x128xf32>
    %c0_8 = arith.constant 0 : index
    %c0_9 = arith.constant 0 : index
    %8 = vector.load %arg5[%c0_8, %c0_9] : memref<1x128xf32, #tpu.memory_space<vmem>>, vector<1x128xf32>
    %9 = vector.broadcast %8 : vector<1x128xf32> to vector<8x128xf32>
    %10 = arith.addf %7, %9 : vector<8x128xf32>
    %c0_10 = arith.constant 0 : index
    %c0_11 = arith.constant 0 : index
    %11 = vector.load %arg6[%c0_10, %c0_11] : memref<8x128xf32, #tpu.memory_space<vmem>>, vector<8x128xf32>
    tpu.vector_store %arg6[%c0_10, %c0_11], %10 {strides = array<i32>} : memref<8x128xf32, #tpu.memory_space<vmem>>, vector<8x128xf32>,
    return
  }
  func.func @transform_0(%arg0: i32) -> (i32, i32) {
    %c0_i32 = arith.constant 0 : i32
    %c0_i32_0 = arith.constant 0 : i32
    return %arg0, %c0_i32 : i32, i32
  }
  func.func @transform_1(%arg0: i32) -> (i32, i32) {
    %c0_i32 = arith.constant 0 : i32
    %c0_i32_0 = arith.constant 0 : i32
    %c0_i32_1 = arith.constant 0 : i32
    return %c0_i32, %c0_i32_0 : i32, i32
  }
  func.func @transform_2(%arg0: i32) -> (i32, i32) {
    %c0_i32 = arith.constant 0 : i32
    %c0_i32_0 = arith.constant 0 : i32
    %c0_i32_1 = arith.constant 0 : i32
    return %c0_i32, %c0_i32_0 : i32, i32
  }
  func.func @transform_3(%arg0: i32) -> (i32, i32) {
    %c0_i32 = arith.constant 0 : i32
    %c0_i32_0 = arith.constant 0 : i32
    %c0_i32_1 = arith.constant 0 : i32
    return %c0_i32, %c0_i32_0 : i32, i32
  }
  func.func @transform_4(%arg0: i32) -> (i32, i32) {
    %c0_i32 = arith.constant 0 : i32
    %c0_i32_0 = arith.constant 0 : i32
    %c0_i32_1 = arith.constant 0 : i32
    return %c0_i32, %c0_i32_0 : i32, i32
  }
  func.func @transform_5(%arg0: i32) -> (i32, i32) {
    %c0_i32 = arith.constant 0 : i32
    %c0_i32_0 = arith.constant 0 : i32
    return %arg0, %c0_i32 : i32, i32
  }
}

</mosaic_0001>

<llo_original>
// kernel: tpu_custom_call.1
$region0: #{tpu_custom_call.1}
  #allocation0 [shape = 'u32[]', space=smem, size = 0x4, offset = 0x4, fixed_abs, tag = 'smem constant byte address 0x4 - core index']
  #allocation1 [shape = 'u32[72,128]{1,0:T(1,128)}', space=vmem, size = 0x9000, scoped, tag = 'internal scratch']
  %s0 = inlined_call_operand.hbm [shape: f32[8,128], index: 0, kind: input, shape index: {}]
  %s1 = inlined_call_operand.hbm [shape: f32[128,128], index: 1, kind: input, shape index: {}]
  %s2 = inlined_call_operand.vmem [shape: f32[1,128], index: 2, kind: input, shape index: {}]
  %s3 = inlined_call_operand.hbm [shape: f32[128,128], index: 3, kind: input, shape index: {}]
  %s4 = inlined_call_operand.vmem [shape: f32[1,128], index: 4, kind: input, shape index: {}]
  %s5 = inlined_call_operand.hbm [shape: f32[8,128], index: 5, kind: output, shape index: {}]
  %s6 = sld [smem:[#allocation0]]
  $region42: #{tpu_custom_call.1} parent=0
    _
  %s8 = ssub.s32 1, %s6
  %s9 = scalar_select 0, %s8, %s6
  $region1: #{tpu_custom_call.1} parent=0
    #allocation2 [shape = 'u8[4096]{0}', space=vmem, size = 0x1000, scoped, tag = 'input window, operand 0, single buffered']
    #allocation3 [shape = 's32[1]{0}', space=sflag, size = 0x4, scoped, tag = 'scoped memory for tpu_custom_call.1']
    #allocation4 [shape = 's32[1]{0}', space=sflag, size = 0x4, scoped, tag = 'scoped memory for tpu_custom_call.1']
    #allocation5 [shape = 'u8[65536]{0}', space=vmem, size = 0x10000, scoped, tag = 'input window, operand 1, single buffered']
    #allocation6 [shape = 's32[1]{0}', space=sflag, size = 0x4, scoped, tag = 'scoped memory for tpu_custom_call.1']
    #allocation7 [shape = 'u8[65536]{0}', space=vmem, size = 0x10000, scoped, tag = 'input window, operand 3, single buffered']
    #allocation8 [shape = 'u8[4096]{0}', space=vmem, size = 0x1000, scoped, tag = 'output window, operand 0, single buffered']
    %10 = vsyncpa [#allocation3], 0
    %11 = vsyncpa [#allocation6], 0
    %12 = vsyncpa [#allocation4], 0
    // Predicated region
    $region2: #{tpu_custom_call.1} parent=1 // pred_check
      _
    $region3: #{tpu_custom_call.1} parent=1 // pred_check_branch
      %14 = sbr.rel (0) target = $region5
    $region4: #{tpu_custom_call.1} parent=1 // pred_region
      %16 = vsyncadd [#allocation3], 0
      %s18 = sshll.u32 %s0, 4
      %s19 = int_to_ptr.hbm [resolvable:$true] %s18
      %s20 = sshll.u32 [#allocation2], 4
      %s21 = int_to_ptr.vmem [resolvable:$true] %s20
      %23 = dma.hbm_to_vmem [thread:$0]  %s19, 128, %s21, [#allocation3]
    $region5: #{tpu_custom_call.1} parent=1 // pred_fallthru
      _
    // Predicated region
    $region6: #{tpu_custom_call.1} parent=1 // pred_check
      _
    $region7: #{tpu_custom_call.1} parent=1 // pred_check_branch
      %25 = sbr.rel (0) target = $region9
    $region8: #{tpu_custom_call.1} parent=1 // pred_region
      %27 = vsyncadd [#allocation6], 0
      %s28 = sshll.u32 %s1, 4
      %s29 = int_to_ptr.hbm [resolvable:$true] %s28
      %s30 = sshll.u32 [#allocation5], 4
      %s31 = int_to_ptr.vmem [resolvable:$true] %s30
      %36 = dma.hbm_to_vmem [thread:$0]  %s29, 2048, %s31, [#allocation6], 128, 128, 8
    $region9: #{tpu_custom_call.1} parent=1 // pred_fallthru
      _
    // Predicated region
    $region10: #{tpu_custom_call.1} parent=1 // pred_check
      _
    $region11: #{tpu_custom_call.1} parent=1 // pred_check_branch
      %38 = sbr.rel (0) target = $region13
    $region12: #{tpu_custom_call.1} parent=1 // pred_region
      _
    $region13: #{tpu_custom_call.1} parent=1 // pred_fallthru
      _
    // Predicated region
    $region14: #{tpu_custom_call.1} parent=1 // pred_check
      _
    $region15: #{tpu_custom_call.1} parent=1 // pred_check_branch
      %40 = sbr.rel (0) target = $region17
    $region16: #{tpu_custom_call.1} parent=1 // pred_region
      %42 = vsyncadd [#allocation6], 0
      %s43 = sshll.u32 %s3, 4
      %s44 = int_to_ptr.hbm [resolvable:$true] %s43
      %s45 = sshll.u32 [#allocation7], 4
      %s46 = int_to_ptr.vmem [resolvable:$true] %s45
      %51 = dma.hbm_to_vmem [thread:$0]  %s44, 2048, %s46, [#allocation6], 128, 128, 8
    $region17: #{tpu_custom_call.1} parent=1 // pred_fallthru
      _
    // Predicated region
    $region18: #{tpu_custom_call.1} parent=1 // pred_check
      _
    $region19: #{tpu_custom_call.1} parent=1 // pred_check_branch
      %53 = sbr.rel (0) target = $region21
    $region20: #{tpu_custom_call.1} parent=1 // pred_region
      _
    $region21: #{tpu_custom_call.1} parent=1 // pred_fallthru
      _
    // Predicated region
    $region22: #{tpu_custom_call.1} parent=1 // pred_check
      _
    $region23: #{tpu_custom_call.1} parent=1 // pred_check_branch
      %55 = sbr.rel (0) target = $region25
    $region24: #{tpu_custom_call.1} parent=1 // pred_region
      %57 = dma.done [#allocation3], 128
    $region25: #{tpu_custom_call.1} parent=1 // pred_fallthru
      _
    // Predicated region
    $region26: #{tpu_custom_call.1} parent=1 // pred_check
      _
    $region27: #{tpu_custom_call.1} parent=1 // pred_check_branch
      %59 = sbr.rel (0) target = $region29
    $region28: #{tpu_custom_call.1} parent=1 // pred_region
      %61 = dma.done [#allocation6], 2048
    $region29: #{tpu_custom_call.1} parent=1 // pred_fallthru
      _
    // Predicated region
    $region30: #{tpu_custom_call.1} parent=1 // pred_check
      _
    $region31: #{tpu_custom_call.1} parent=1 // pred_check_branch
      %63 = sbr.rel (0) target = $region33
    $region32: #{tpu_custom_call.1} parent=1 // pred_region
      %65 = dma.done [#allocation6], 2048
    $region33: #{tpu_custom_call.1} parent=1 // pred_fallthru
      _
    %v66 = vld [vmem:[#allocation2] sm:$0xff]
    %v67 = vld [vmem:[#allocation5] sm:$0xff]
    %v68 = vld [vmem:[#allocation5 + $0x8] sm:$0xff]
    %v69 = vld [vmem:[#allocation5 + $0x10] sm:$0xff]
    %v70 = vld [vmem:[#allocation5 + $0x18] sm:$0xff]
    %v71 = vld [vmem:[#allocation5 + $0x20] sm:$0xff]
    %v72 = vld [vmem:[#allocation5 + $0x28] sm:$0xff]
    %v73 = vld [vmem:[#allocation5 + $0x30] sm:$0xff]
    %v74 = vld [vmem:[#allocation5 + $0x38] sm:$0xff]
    %v75 = vld [vmem:[#allocation5 + $0x40] sm:$0xff]
    %v76 = vld [vmem:[#allocation5 + $0x48] sm:$0xff]
    %v77 = vld [vmem:[#allocation5 + $0x50] sm:$0xff]
    %v78 = vld [vmem:[#allocation5 + $0x58] sm:$0xff]
    %v79 = vld [vmem:[#allocation5 + $0x60] sm:$0xff]
    %v80 = vld [vmem:[#allocation5 + $0x68] sm:$0xff]
    %v81 = vld [vmem:[#allocation5 + $0x70] sm:$0xff]
    %v82 = vld [vmem:[#allocation5 + $0x78] sm:$0xff]
    %v83 = vld [vmem:[%s2] sm:$0x1]
    %v85 = vperm.slane %v83, 0
    %87 = vmatpush.msra.mxu0 %v82
    %88 = vmatpush.msra.mxu0 %v81
    %89 = vmatpush.msra.mxu0 %v80
    %90 = vmatpush.msra.mxu0 %v79
    %91 = vmatpush.msra.mxu0 %v78
    %92 = vmatpush.msra.mxu0 %v77
    %93 = vmatpush.msra.mxu0 %v76
    %94 = vmatpush.msra.mxu0 %v75
    %95 = vmatpush.msra.mxu0 %v74
    %96 = vmatpush.msra.mxu0 %v73
    %97 = vmatpush.msra.mxu0 %v72
    %98 = vmatpush.msra.mxu0 %v71
    %99 = vmatpush.msra.mxu0 %v70
    %100 = vmatpush.msra.mxu0 %v69
    %101 = vmatpush.msra.mxu0 %v68
    %102 = vmatpush.msra.mxu0 %v67
    %103 = vmatmul.f32.gmra.mxu0 %v66
    %v104 = vpop.f32.mrf.mxu0
    %v105 = vadd.f32 %v85, %v104
    %106 = vdwg.mxu0
    %v107 = vld [vmem:[#allocation7] sm:$0xff]
    %v108 = vld [vmem:[#allocation7 + $0x8] sm:$0xff]
    %v109 = vld [vmem:[#allocation7 + $0x10] sm:$0xff]
    %v110 = vld [vmem:[#allocation7 + $0x18] sm:$0xff]
    %v111 = vld [vmem:[#allocation7 + $0x20] sm:$0xff]
    %v112 = vld [vmem:[#allocation7 + $0x28] sm:$0xff]
    %v113 = vld [vmem:[#allocation7 + $0x30] sm:$0xff]
    %v114 = vld [vmem:[#allocation7 + $0x38] sm:$0xff]
    %v115 = vld [vmem:[#allocation7 + $0x40] sm:$0xff]
    %v116 = vld [vmem:[#allocation7 + $0x48] sm:$0xff]
    %v117 = vld [vmem:[#allocation7 + $0x50] sm:$0xff]
    %v118 = vld [vmem:[#allocation7 + $0x58] sm:$0xff]
    %v119 = vld [vmem:[#allocation7 + $0x60] sm:$0xff]
    %v120 = vld [vmem:[#allocation7 + $0x68] sm:$0xff]
    %v121 = vld [vmem:[#allocation7 + $0x70] sm:$0xff]
    %v122 = vld [vmem:[#allocation7 + $0x78] sm:$0xff]
    %v123 = vld [vmem:[%s4] sm:$0x1]
    %v125 = vperm.slane %v123, 0
    %127 = vmatpush.msra.mxu0 %v122
    %128 = vmatpush.msra.mxu0 %v121
    %129 = vmatpush.msra.mxu0 %v120
    %130 = vmatpush.msra.mxu0 %v119
    %131 = vmatpush.msra.mxu0 %v118
    %132 = vmatpush.msra.mxu0 %v117
    %133 = vmatpush.msra.mxu0 %v116
    %134 = vmatpush.msra.mxu0 %v115
    %135 = vmatpush.msra.mxu0 %v114
    %136 = vmatpush.msra.mxu0 %v113
    %137 = vmatpush.msra.mxu0 %v112
    %138 = vmatpush.msra.mxu0 %v111
    %139 = vmatpush.msra.mxu0 %v110
    %140 = vmatpush.msra.mxu0 %v109
    %141 = vmatpush.msra.mxu0 %v108
    %142 = vmatpush.msra.mxu0 %v107
    %143 = vmatmul.f32.gmra.mxu0 %v105
    %v144 = vpop.f32.mrf.mxu0
    %v145 = vadd.f32 %v125, %v144
    %146 = vdwg.mxu0
    %147 = vst [vmem:[#allocation8] sm:$0xff] %v145
    // Predicated region
    $region34: #{tpu_custom_call.1} parent=1 // pred_check
      _
    $region35: #{tpu_custom_call.1} parent=1 // pred_check_branch
      %149 = sbr.rel (0) target = $region37
    $region36: #{tpu_custom_call.1} parent=1 // pred_region
      %151 = vsyncadd [#allocation4], 0
      %s153 = sshll.u32 [#allocation8], 4
      %s154 = int_to_ptr.vmem [resolvable:$true] %s153
      %s155 = sshll.u32 %s5, 4
      %s156 = int_to_ptr.hbm [resolvable:$true] %s155
      %158 = dma.vmem_to_hbm [thread:$0]  %s154, 128, %s156, [#allocation4]
    $region37: #{tpu_custom_call.1} parent=1 // pred_fallthru
      _
    // Predicated region
    $region38: #{tpu_custom_call.1} parent=1 // pred_check
      _
    $region39: #{tpu_custom_call.1} parent=1 // pred_check_branch
      %160 = sbr.rel (0) target = $region41
    $region40: #{tpu_custom_call.1} parent=1 // pred_region
      %162 = dma.done [#allocation4], 128
    $region41: #{tpu_custom_call.1} parent=1 // pred_fallthru
      _
    %163 = vsyncpa [#allocation3], 1
    %164 = vsyncpa [#allocation6], 1
    %165 = vsyncpa [#allocation4], 1

</llo_original>
